<compile_context>
chip_gen: v7x
topology: tpu7x:2x2x1
jax: 0.10.0
libtpu: 0.0.40
codegen_flags: <defaults>
</compile_context>

<pallas_src>
import functools

import jax
import jax.numpy as jnp
from jax import lax
from jax.experimental import pallas as pl
from jax.experimental.pallas import tpu as pltpu


def _conv_block_kernel(x_ref, w_ref, o_ref, *, K, dilation, pad, L_out):
    """Whole problem in one invocation.

    x_ref: (B, C_in, L)            unpadded input
    w_ref: (C_out, K*C_in + 1)     flattened conv weight with bias as last column
    o_ref: (C_out, B*L_out)        lane-dense output slab
    """
    B, C_in, L = x_ref.shape
    x = x_ref[...]  # (B, C_in, L)

    # Replicate ('edge') padding built in VMEM — no extra HBM pass in the wrapper.
    if pad > 0:
        left = jnp.broadcast_to(x[:, :, :1], (B, C_in, pad))
        right = jnp.broadcast_to(x[:, :, L - 1:], (B, C_in, pad))
        x_pad = jnp.concatenate([left, x, right], axis=-1)  # (B, C_in, L + 2*pad)
    else:
        x_pad = x

    # im2col: T[k*C_in + c, b*L_out + t] = x_pad[b, c, t + k*dilation]
    cols = []
    for b in range(B):                      # B is static -> unrolled
        xb = x_pad[b]                       # (C_in, Lp)
        taps = [xb[:, k * dilation: k * dilation + L_out] for k in range(K)]
        cols.append(jnp.concatenate(taps, axis=0))          # (K*C_in, L_out)
    t_mat = jnp.concatenate(cols, axis=1) if B > 1 else cols[0]  # (K*C_in, B*L_out)

    # Bias folded into the matmul via a ones row (bias is the last weight column).
    ones_row = jnp.ones((1, t_mat.shape[1]), t_mat.dtype)
    t_aug = jnp.concatenate([t_mat, ones_row], axis=0)       # (K*C_in + 1, B*L_out)

    # Single MXU matmul: conv taps + batch + bias fused.
    y = jnp.dot(w_ref[...], t_aug, preferred_element_type=jnp.float32)

    y = jnp.maximum(y, 0.0)  # activation_function = ReLU
    # batch_norm_layer = Identity (batch_norm=False); dropout_layer p=0.0 = Identity
    o_ref[...] = y.astype(o_ref.dtype)


def conv_block_1d(x, weight, bias, *, kernel_size, stride=1, dilation=1, mode="same"):
    """x: (B, C_in, L); weight: (C_out, C_in, K); bias: (C_out,)."""
    # TODO(synk): stride > 1 not implemented (module default stride=1).
    assert stride == 1, "only stride=1 (module default) is implemented"
    B, C_in, L = x.shape
    C_out, _, K = weight.shape
    assert K == kernel_size

    # ConvBlock1D.get_padding_size
    if mode == "same":
        if kernel_size % 2 == 0:
            raise RuntimeWarning(f"kernel_size ({kernel_size}) is not even")
        pad = (kernel_size // 2) * dilation
    elif mode == "valid":
        pad = 0
    else:
        raise RuntimeError(f"Invalid mode ({mode})")

    L_out = L + 2 * pad - dilation * (kernel_size - 1)  # stride = 1

    # Flatten weight so the kernel sees a dense 2D operand:
    # row index r = k*C_in + c  <->  weight[o, c, k]; last column holds the bias.
    w_flat = jnp.transpose(weight, (0, 2, 1)).reshape(C_out, K * C_in)
    w_aug = jnp.concatenate([w_flat, bias.reshape(C_out, 1)], axis=1)  # (C_out, K*C_in+1)

    kernel = functools.partial(
        _conv_block_kernel, K=K, dilation=dilation, pad=pad, L_out=L_out
    )

    y2 = pl.pallas_call(
        kernel,
        out_shape=jax.ShapeDtypeStruct((C_out, B * L_out), x.dtype),
        grid=(1,),  # single step: whole batch fits trivially in VMEM
        in_specs=[
            pl.BlockSpec((B, C_in, L), lambda i: (0, 0, 0)),
            pl.BlockSpec((C_out, K * C_in + 1), lambda i: (0, 0)),
        ],
        out_specs=pl.BlockSpec((C_out, B * L_out), lambda i: (0, 0)),
        compiler_params=pltpu.CompilerParams(dimension_semantics=("arbitrary",)),
    )(x, w_aug)

    # (C_out, B*L_out) -> (B, C_out, L_out)
    return jnp.transpose(y2.reshape(C_out, B, L_out), (1, 0, 2))


def _reference(x, weight, bias, *, kernel_size, dilation=1, mode="same"):
    pad = (kernel_size // 2) * dilation if mode == "same" else 0
    x_pad = jnp.pad(x, ((0, 0), (0, 0), (pad, pad)), mode="edge")
    y = lax.conv_general_dilated(
        x_pad, weight,
        window_strides=(1,), padding="VALID",
        rhs_dilation=(dilation,),
        dimension_numbers=("NCH", "OIH", "NCH"),
    )
    y = y + bias[None, :, None]
    return jnp.maximum(y, 0.0)


if __name__ == "__main__":
    # Small shapes consistent with the module: batch=2, in_ch=4, out_ch=8, L=16, K=3
    B, C_in, C_out, L, K = 2, 4, 8, 16, 3

    key = jax.random.PRNGKey(0)
    kx, kw, kb = jax.random.split(key, 3)
    x = jax.random.normal(kx, (B, C_in, L), dtype=jnp.float32)
    # Deterministic param init (PyTorch-like uniform bound 1/sqrt(C_in*K))
    bound = 1.0 / (C_in * K) ** 0.5
    weight = jax.random.uniform(kw, (C_out, C_in, K), jnp.float32, -bound, bound)
    bias = jax.random.uniform(kb, (C_out,), jnp.float32, -bound, bound)

    y = conv_block_1d(x, weight, bias, kernel_size=K, dilation=1, mode="same")
    y = jax.block_until_ready(y)

    y_ref = _reference(x, weight, bias, kernel_size=K, dilation=1, mode="same")
    assert y.shape == (B, C_out, L), y.shape
    assert jnp.allclose(y, y_ref, atol=1e-5, rtol=1e-5), float(jnp.max(jnp.abs(y - y_ref)))

    print("KERNEL_OK")
</pallas_src>

<mosaic_0001>
module attributes {stable_mosaic.version = 11 : i64} {
  func.func @_conv_block_kernel(%arg0: i32, %arg1: memref<2x4x16xf32, #tpu.memory_space<vmem>>, %arg2: memref<8x13xf32, #tpu.memory_space<vmem>>, %arg3: memref<8x32xf32, #tpu.memory_space<vmem>>) attributes {dimension_semantics = [#tpu.dimension_semantics<arbitrary>], iteration_bounds = array<i64: 1>, scalar_prefetch = 0 : i64, scratch_operands = 0 : i64, tpu.core_type = #tpu.core_type<tc>, window_params = [{pipeline_mode = #tpu.pipeline_mode<synchronous>, transform_indices = @transform_0, window_bounds = array<i64: 2, 4, 16>}, {pipeline_mode = #tpu.pipeline_mode<synchronous>, transform_indices = @transform_1, window_bounds = array<i64: 8, 13>}, {pipeline_mode = #tpu.pipeline_mode<synchronous>, transform_indices = @transform_2, window_bounds = array<i64: 8, 32>}]} {
    %c0 = arith.constant 0 : index
    %c0_0 = arith.constant 0 : index
    %c0_1 = arith.constant 0 : index
    %0 = vector.load %arg1[%c0, %c0_0, %c0_1] : memref<2x4x16xf32, #tpu.memory_space<vmem>>, vector<2x4x16xf32>
    %1 = vector.extract_strided_slice %0 {offsets = [0, 0, 0], sizes = [2, 4, 1], strides = [1, 1, 1]} : vector<2x4x16xf32> to vector<2x4x1xf32>
    %2 = vector.extract_strided_slice %0 {offsets = [0, 0, 15], sizes = [2, 4, 1], strides = [1, 1, 1]} : vector<2x4x16xf32> to vector<2x4x1xf32>
    %3 = tpu.concatenate %1, %0, %2 in 2 : vector<2x4x1xf32>, vector<2x4x16xf32>, vector<2x4x1xf32> -> vector<2x4x18xf32>
    %4 = vector.extract_strided_slice %3 {offsets = [0, 0, 0], sizes = [1, 4, 18], strides = [1, 1, 1]} : vector<2x4x18xf32> to vector<1x4x18xf32>
    %5 = vector.shape_cast %4 : vector<1x4x18xf32> to vector<4x18xf32>
    %6 = vector.extract_strided_slice %5 {offsets = [0, 0], sizes = [4, 16], strides = [1, 1]} : vector<4x18xf32> to vector<4x16xf32>
    %7 = vector.extract_strided_slice %5 {offsets = [0, 1], sizes = [4, 16], strides = [1, 1]} : vector<4x18xf32> to vector<4x16xf32>
    %8 = vector.extract_strided_slice %5 {offsets = [0, 2], sizes = [4, 16], strides = [1, 1]} : vector<4x18xf32> to vector<4x16xf32>
    %9 = tpu.concatenate %6, %7, %8 in 0 : vector<4x16xf32>, vector<4x16xf32>, vector<4x16xf32> -> vector<12x16xf32>
    %10 = vector.extract_strided_slice %3 {offsets = [1, 0, 0], sizes = [1, 4, 18], strides = [1, 1, 1]} : vector<2x4x18xf32> to vector<1x4x18xf32>
    %11 = vector.shape_cast %10 : vector<1x4x18xf32> to vector<4x18xf32>
    %12 = vector.extract_strided_slice %11 {offsets = [0, 0], sizes = [4, 16], strides = [1, 1]} : vector<4x18xf32> to vector<4x16xf32>
    %13 = vector.extract_strided_slice %11 {offsets = [0, 1], sizes = [4, 16], strides = [1, 1]} : vector<4x18xf32> to vector<4x16xf32>
    %14 = vector.extract_strided_slice %11 {offsets = [0, 2], sizes = [4, 16], strides = [1, 1]} : vector<4x18xf32> to vector<4x16xf32>
    %15 = tpu.concatenate %12, %13, %14 in 0 : vector<4x16xf32>, vector<4x16xf32>, vector<4x16xf32> -> vector<12x16xf32>
    %16 = tpu.concatenate %9, %15 in 1 : vector<12x16xf32>, vector<12x16xf32> -> vector<12x32xf32>
    %cst = arith.constant 1.000000e+00 : f32
    %17 = vector.broadcast %cst : f32 to vector<1x32xf32>
    %18 = tpu.concatenate %16, %17 in 0 : vector<12x32xf32>, vector<1x32xf32> -> vector<13x32xf32>
    %c0_2 = arith.constant 0 : index
    %c0_3 = arith.constant 0 : index
    %19 = vector.load %arg2[%c0_2, %c0_3] : memref<8x13xf32, #tpu.memory_space<vmem>>, vector<8x13xf32>
    %cst_4 = arith.constant dense<0.000000e+00> : vector<8x32xf32>
    %20 = tpu.matmul %19, %18, %cst_4 {dimension_numbers = #tpu.dot_dimension_numbers<[1], [0], [0], [1], [0, 0, 1, 1], [], []>} : vector<8x13xf32>, vector<13x32xf32>, vector<8x32xf32> -> vector<8x32xf32>
    %cst_5 = arith.constant 0.000000e+00 : f32
    %21 = vector.broadcast %cst_5 : f32 to vector<8x32xf32>
    %22 = arith.maximumf %20, %21 : vector<8x32xf32>
    %c0_6 = arith.constant 0 : index
    %c0_7 = arith.constant 0 : index
    %23 = vector.load %arg3[%c0_6, %c0_7] : memref<8x32xf32, #tpu.memory_space<vmem>>, vector<8x32xf32>
    tpu.vector_store %arg3[%c0_6, %c0_7], %22 {strides = array<i32>} : memref<8x32xf32, #tpu.memory_space<vmem>>, vector<8x32xf32>,
    return
  }
  func.func @transform_0(%arg0: i32) -> (i32, i32, i32) {
    %c0_i32 = arith.constant 0 : i32
    %c0_i32_0 = arith.constant 0 : i32
    %c0_i32_1 = arith.constant 0 : i32
    %c0_i32_2 = arith.constant 0 : i32
    return %c0_i32, %c0_i32_0, %c0_i32_1 : i32, i32, i32
  }
  func.func @transform_1(%arg0: i32) -> (i32, i32) {
    %c0_i32 = arith.constant 0 : i32
    %c0_i32_0 = arith.constant 0 : i32
    %c0_i32_1 = arith.constant 0 : i32
    return %c0_i32, %c0_i32_0 : i32, i32
  }
  func.func @transform_2(%arg0: i32) -> (i32, i32) {
    %c0_i32 = arith.constant 0 : i32
    %c0_i32_0 = arith.constant 0 : i32
    %c0_i32_1 = arith.constant 0 : i32
    return %c0_i32, %c0_i32_0 : i32, i32
  }
}

</mosaic_0001>

<llo_original>
// kernel: tpu_custom_call.1
$region0: #{tpu_custom_call.1}
  #allocation0 [shape = 'u32[]', space=smem, size = 0x4, offset = 0x4, fixed_abs, tag = 'smem constant byte address 0x4 - core index']
  #allocation1 [shape = 'u32[144,128]{1,0:T(1,128)}', space=vmem, size = 0x12000, scoped, tag = 'internal scratch']
  %s0 = inlined_call_operand.hbm [shape: f32[2,4,16], index: 0, kind: input, shape index: {}]
  %s1 = inlined_call_operand.hbm [shape: f32[8,13], index: 1, kind: input, shape index: {}]
  %s2 = inlined_call_operand.hbm [shape: f32[8,32], index: 2, kind: output, shape index: {}]
  %s3 = sld [smem:[#allocation0]]
  $region26: #{tpu_custom_call.1} parent=0
    _
  %s5 = ssub.s32 1, %s3
  %s6 = scalar_select 0, %s5, %s3
  $region1: #{tpu_custom_call.1} parent=0
    #allocation2 [shape = 'u8[4096]{0}', space=vmem, size = 0x1000, scoped, tag = 'input window, operand 0, single buffered']
    #allocation3 [shape = 's32[1]{0}', space=sflag, size = 0x4, scoped, tag = 'scoped memory for tpu_custom_call.1']
    #allocation4 [shape = 's32[1]{0}', space=sflag, size = 0x4, scoped, tag = 'scoped memory for tpu_custom_call.1']
    #allocation5 [shape = 'u8[4096]{0}', space=vmem, size = 0x1000, scoped, tag = 'input window, operand 1, single buffered']
    #allocation6 [shape = 's32[1]{0}', space=sflag, size = 0x4, scoped, tag = 'scoped memory for tpu_custom_call.1']
    #allocation7 [shape = 'u8[4096]{0}', space=vmem, size = 0x1000, scoped, tag = 'output window, operand 0, single buffered']
    %7 = vsyncpa [#allocation3], 0
    %8 = vsyncpa [#allocation6], 0
    %9 = vsyncpa [#allocation4], 0
    // Predicated region
    $region2: #{tpu_custom_call.1} parent=1 // pred_check
      _
    $region3: #{tpu_custom_call.1} parent=1 // pred_check_branch
      %11 = sbr.rel (0) target = $region5
    $region4: #{tpu_custom_call.1} parent=1 // pred_region
      %s13 = ssub.s32 128, 128
      %14 = vsyncadd [#allocation3], %s13
      %s15 = sshll.u32 [#allocation2], 4
      %s16 = int_to_ptr.vmem [resolvable:$true] %s15
      %21 = dma.hbm_to_vmem [thread:$0]  %s0, 128, %s16, [#allocation3], 64, 64, 4
    $region5: #{tpu_custom_call.1} parent=1 // pred_fallthru
      _
    // Predicated region
    $region6: #{tpu_custom_call.1} parent=1 // pred_check
      _
    $region7: #{tpu_custom_call.1} parent=1 // pred_check_branch
      %23 = sbr.rel (0) target = $region9
    $region8: #{tpu_custom_call.1} parent=1 // pred_region
      %s25 = ssub.s32 128, 128
      %26 = vsyncadd [#allocation6], %s25
      %s28 = sshll.u32 [#allocation5], 4
      %s29 = int_to_ptr.vmem [resolvable:$true] %s28
      %31 = dma.hbm_to_vmem [thread:$0]  %s1, 128, %s29, [#allocation6]
    $region9: #{tpu_custom_call.1} parent=1 // pred_fallthru
      _
    // Predicated region
    $region10: #{tpu_custom_call.1} parent=1 // pred_check
      _
    $region11: #{tpu_custom_call.1} parent=1 // pred_check_branch
      %33 = sbr.rel (0) target = $region13
    $region12: #{tpu_custom_call.1} parent=1 // pred_region
      %34 = dma.done [#allocation3], 128
    $region13: #{tpu_custom_call.1} parent=1 // pred_fallthru
      _
    // Predicated region
    $region14: #{tpu_custom_call.1} parent=1 // pred_check
      _
    $region15: #{tpu_custom_call.1} parent=1 // pred_check_branch
      %36 = sbr.rel (0) target = $region17
    $region16: #{tpu_custom_call.1} parent=1 // pred_region
      %37 = dma.done [#allocation6], 128
    $region17: #{tpu_custom_call.1} parent=1 // pred_fallthru
      _
    %v38 = vld [vmem:[#allocation2] sm:$0xf]
    %v39 = vld [vmem:[#allocation2 + $0x4] sm:$0xf]
    %42 = vrot.lane.b32.xlu0 %v38, 1
    %v43 = vpop.permute.xlu0 %42
    %44 = vrot.lane.b32.xlu0 %v39, 1
    %v45 = vpop.permute.xlu0 %44
    %48 = vrot.lane.b32.xlu0 %v38, 2
    %v49 = vpop.permute.xlu0 %48
    %50 = vrot.lane.b32.xlu0 %v39, 2
    %v51 = vpop.permute.xlu0 %50
    %vm54 = vcmask 7168
    %v55 = vsel %vm54, %v38, %v43
    %v56 = vsel %vm54, %v39, %v45
    %vm57 = vcmask 138240
    %v58 = vsel %vm57, %v55, %v49
    %v59 = vsel %vm57, %v56, %v51
    %v61 = vrot.slane %v58, 4
    %62 = vrot.lane.b32.xlu0 %v61, 127
    %v63 = vpop.permute.xlu0 %62
    %65 = vrot.lane.b32.xlu0 %v58, 126
    %v66 = vpop.permute.xlu0 %65
    %vm68 = vcmask 1043456
    %v69 = vsel %vm68, %v58, %v63
    %v71 = vrot.slane %v59, 4
    %72 = vrot.lane.b32.xlu0 %v71, 127
    %v73 = vpop.permute.xlu0 %72
    %75 = vrot.lane.b32.xlu0 %v59, 126
    %v76 = vpop.permute.xlu0 %75
    %v77 = vsel %vm68, %v59, %v73
    %79 = vrot.lane.b32.xlu0 %v77, 16
    %v80 = vpop.permute.xlu0 %79
    %81 = vrot.lane.b32.xlu0 %v76, 16
    %v82 = vpop.permute.xlu0 %81
    %vm85 = vcmask 130048
    %v86 = vsel %vm85, %v69, %v80
    %v87 = vsel %vm85, %v66, %v82
    %v88 = vsel %vm68, %v87, 1.0
    %v89 = vld [vmem:[#allocation5] sm:$0xff]
    %vm90 = vcmask 105472
    %v92 = vsel %vm90, %v89, 0
    %vm94 = vcmask 1044480
    %v96 = vsel %vm94, %v88, 0
    %98 = vmatprep.subr.mxu0 0.0
    %99 = vmatpush1.msra.mxu0 %v86
    %100 = vmatprep.subr.mxu0 0.0
    %101 = vmatpush1.msra.mxu0 %v96
    %102 = vmatprep.subr.mxu0 0.0
    %103 = vmatpush1.msra.mxu0 0.0
    %104 = vmatprep.subr.mxu0 0.0
    %105 = vmatpush1.msra.mxu0 0.0
    %106 = vmatprep.subr.mxu0 0.0
    %107 = vmatpush1.msra.mxu0 0.0
    %108 = vmatprep.subr.mxu0 0.0
    %109 = vmatpush1.msra.mxu0 0.0
    %110 = vmatprep.subr.mxu0 0.0
    %111 = vmatpush1.msra.mxu0 0.0
    %112 = vmatprep.subr.mxu0 0.0
    %113 = vmatpush1.msra.mxu0 0.0
    %114 = vmatprep.subr.mxu0 0.0
    %115 = vmatpush1.msra.mxu0 0.0
    %116 = vmatprep.subr.mxu0 0.0
    %117 = vmatpush1.msra.mxu0 0.0
    %118 = vmatprep.subr.mxu0 0.0
    %119 = vmatpush1.msra.mxu0 0.0
    %120 = vmatprep.subr.mxu0 0.0
    %121 = vmatpush1.msra.mxu0 0.0
    %122 = vmatprep.subr.mxu0 0.0
    %123 = vmatpush1.msra.mxu0 0.0
    %124 = vmatprep.subr.mxu0 0.0
    %125 = vmatpush1.msra.mxu0 0.0
    %126 = vmatprep.subr.mxu0 0.0
    %127 = vmatpush1.msra.mxu0 0.0
    %128 = vmatprep.subr.mxu0 0.0
    %129 = vmatpush1.msra.mxu0 0.0
    %130 = vmatprep.subr.mxu0 0.0
    %131 = vmatpush1.msra.mxu0 0.0
    %132 = vmatprep.subr.mxu0 0.0
    %133 = vmatpush1.msra.mxu0 0.0
    %134 = vmatprep.subr.mxu0 0.0
    %135 = vmatpush1.msra.mxu0 0.0
    %136 = vmatprep.subr.mxu0 0.0
    %137 = vmatpush1.msra.mxu0 0.0
    %138 = vmatprep.subr.mxu0 0.0
    %139 = vmatpush1.msra.mxu0 0.0
    %140 = vmatprep.subr.mxu0 0.0
    %141 = vmatpush1.msra.mxu0 0.0
    %142 = vmatprep.subr.mxu0 0.0
    %143 = vmatpush1.msra.mxu0 0.0
    %144 = vmatprep.subr.mxu0 0.0
    %145 = vmatpush1.msra.mxu0 0.0
    %146 = vmatprep.subr.mxu0 0.0
    %147 = vmatpush1.msra.mxu0 0.0
    %148 = vmatprep.subr.mxu0 0.0
    %149 = vmatpush1.msra.mxu0 0.0
    %150 = vmatprep.subr.mxu0 0.0
    %151 = vmatpush1.msra.mxu0 0.0
    %152 = vmatprep.subr.mxu0 0.0
    %153 = vmatpush1.msra.mxu0 0.0
    %154 = vmatprep.subr.mxu0 0.0
    %155 = vmatpush1.msra.mxu0 0.0
    %156 = vmatprep.subr.mxu0 0.0
    %157 = vmatpush1.msra.mxu0 0.0
    %158 = vmatprep.subr.mxu0 0.0
    %159 = vmatpush1.msra.mxu0 0.0
    %160 = vmatprep.subr.mxu0 0.0
    %161 = vmatpush1.msra.mxu0 0.0
    %162 = vmatprep.mubr.f32.mxu0 0.0
    %163 = vmatmul.mubr.f32.gmra.mrb[0].mxu0 %v92
    %v164 = vpop.f32.mrb[0].mxu0
    %v165 = vadd.f32 0.0, %v164
    %v166 = vpop.f32.mrb[0].mxu0
    %167 = vdwg.mxu0
    %v168 = vmax.f32 %v165, 0.0
    %vm169 = vcmask 261120
    %170 = vst.msk [vmem:[#allocation7] sm:$0xff] %vm169, %v168
    // Predicated region
    $region18: #{tpu_custom_call.1} parent=1 // pred_check
      _
    $region19: #{tpu_custom_call.1} parent=1 // pred_check_branch
      %172 = sbr.rel (0) target = $region21
    $region20: #{tpu_custom_call.1} parent=1 // pred_region
      %s174 = ssub.s32 128, 128
      %175 = vsyncadd [#allocation4], %s174
      %s177 = sshll.u32 [#allocation7], 4
      %s178 = int_to_ptr.vmem [resolvable:$true] %s177
      %180 = dma.vmem_to_hbm [thread:$0]  %s178, 128, %s2, [#allocation4]
    $region21: #{tpu_custom_call.1} parent=1 // pred_fallthru
      _
    // Predicated region
    $region22: #{tpu_custom_call.1} parent=1 // pred_check
      _
    $region23: #{tpu_custom_call.1} parent=1 // pred_check_branch
      %182 = sbr.rel (0) target = $region25
    $region24: #{tpu_custom_call.1} parent=1 // pred_region
      %183 = dma.done [#allocation4], 128
    $region25: #{tpu_custom_call.1} parent=1 // pred_fallthru
      _
    %184 = vsyncpa [#allocation3], 1
    %185 = vsyncpa [#allocation6], 1
    %186 = vsyncpa [#allocation4], 1

</llo_original>
